<compile_context>
chip_gen: v5e
topology: v5e:2x2
jax: 0.10.0
libtpu: 0.0.40
codegen_flags: <defaults>
</compile_context>

<pallas_src>
import numpy as np
import jax
import jax.numpy as jnp
from jax import lax
from jax.experimental import pallas as pl
from jax.experimental.pallas import tpu as pltpu

# ---------------- problem configuration (ShuffleAttention(channel=C, G=G)) -------------
B, C, H, W = 2, 64, 16, 16
G = 8
CHALF = C // (2 * G)          # channels per half-group = 4
HW = H * W                    # 256
EPS = 1e-5                    # nn.GroupNorm default eps
PARAM_LANES = 128             # lane-pad the 3 per-row params to one full lane width


# ================================ Pallas kernel =========================================
def shuffle_attention_kernel(x_ref, p_ref, o_ref):
    # x_ref: (B, C//2, HW)  -- channels of shuffle-half i, both batches
    # p_ref: (C//2, PARAM_LANES) -- per-row [alpha, beta_mu, beta0, 0, ...]
    x = x_ref[...].astype(jnp.float32)

    alpha = p_ref[:, 0:1][None]            # (1, C//2, 1)
    beta_mu = p_ref[:, 1:2][None]          # (1, C//2, 1)
    beta0 = p_ref[:, 2:3][None]            # (1, C//2, 1)

    mu = jnp.mean(x, axis=-1, keepdims=True)            # (B, C//2, 1)  lane reduce (XLU)
    xc = x - mu
    var = jnp.mean(xc * xc, axis=-1, keepdims=True)     # biased variance (GroupNorm)
    rstd = lax.rsqrt(var + EPS)                         # EUP

    # channel branch rows: alpha = 0           -> t = cweight*mu + cbias
    # spatial (GN) branch rows: beta_mu = 0    -> t = sweight*(gamma*(x-mu)*rstd + beta) + sbias
    t = (alpha * rstd) * xc + beta_mu * mu + beta0
    gate = 1.0 / (1.0 + jnp.exp(-t))                    # sigmoid (EUP exp + divide)

    o_ref[...] = (x * gate).astype(o_ref.dtype)


# ================================ parameters ============================================
def init_params(key):
    # Module parameters (cweight/cbias/sweight/sbias of shape (1, C//(2G), 1, 1) in
    # PyTorch, GroupNorm affine of shape (C//(2G),)).  Random values for a meaningful test.
    ks = jax.random.split(key, 6)
    cweight = 0.5 * jax.random.normal(ks[0], (CHALF,), jnp.float32)
    cbias = 1.0 + 0.5 * jax.random.normal(ks[1], (CHALF,), jnp.float32)
    sweight = 0.5 * jax.random.normal(ks[2], (CHALF,), jnp.float32)
    sbias = 1.0 + 0.5 * jax.random.normal(ks[3], (CHALF,), jnp.float32)
    gn_w = 1.0 + 0.5 * jax.random.normal(ks[4], (CHALF,), jnp.float32)
    gn_b = 0.5 * jax.random.normal(ks[5], (CHALF,), jnp.float32)
    return cweight, cbias, sweight, sbias, gn_w, gn_b


def pack_row_params(params):
    """Per-row (alpha, beta_mu, beta0) packed into one lane-dense (2, C//2, 128) slab."""
    cweight, cbias, sweight, sbias, gn_w, gn_b = (np.asarray(p) for p in params)
    P = np.zeros((2, C // 2, PARAM_LANES), np.float32)
    cpg = C // G                                   # channels per group = 8
    for i in range(2):                             # shuffle half
        for j in range(C // 2):                    # row within half
            ch = i * (C // 2) + j                  # original / pre-shuffle channel index
            m = ch % cpg
            if m < CHALF:                          # x0: channel-attention branch
                p = m
                alpha, beta_mu, beta0 = 0.0, cweight[p], cbias[p]
            else:                                  # x1: GroupNorm spatial branch
                p = m - CHALF
                alpha = sweight[p] * gn_w[p]
                beta_mu = 0.0
                beta0 = sweight[p] * gn_b[p] + sbias[p]
            P[i, j, 0] = alpha
            P[i, j, 1] = beta_mu
            P[i, j, 2] = beta0
    return jnp.asarray(P)


# ================================ wrapper ===============================================
@jax.jit
def shuffle_attention_forward(x, row_params):
    xr = x.reshape(B, C, HW)                       # glue: NCHW -> (B, C, H*W), free
    out = pl.pallas_call(
        shuffle_attention_kernel,
        out_shape=jax.ShapeDtypeStruct((B, C // 2, 2 * HW), x.dtype),
        grid_spec=pltpu.PrefetchScalarGridSpec(
            num_scalar_prefetch=0,
            grid=(2,),                             # one step per channel-shuffle half
            in_specs=[
                pl.BlockSpec((B, C // 2, HW), lambda i: (0, i, 0)),
                pl.BlockSpec((None, C // 2, PARAM_LANES), lambda i: (i, 0, 0)),
            ],
            out_specs=pl.BlockSpec((B, C // 2, HW), lambda i: (0, 0, i)),
        ),
        compiler_params=pltpu.CompilerParams(dimension_semantics=("parallel",)),
    )(xr, row_params)
    # (B, C//2, 2*HW) memory layout == channel-shuffled (B, C, H, W): free reshape.
    return out.reshape(B, C, H, W)


# ======================= pure-JAX reference (for checking) ==============================
def shuffle_attention_reference(x, params):
    cweight, cbias, sweight, sbias, gn_w, gn_b = params
    b, c, h, w = x.shape
    xf = x.astype(jnp.float32).reshape(b * G, c // G, h, w)
    x0, x1 = xf[:, :CHALF], xf[:, CHALF:]

    def sigmoid(t):
        return 1.0 / (1.0 + jnp.exp(-t))

    # channel attention branch
    s = jnp.mean(x0, axis=(2, 3), keepdims=True)
    x_channel = x0 * sigmoid(cweight[None, :, None, None] * s
                             + cbias[None, :, None, None])

    # spatial attention branch: GroupNorm with num_groups == num_channels
    mu = jnp.mean(x1, axis=(2, 3), keepdims=True)
    var = jnp.mean((x1 - mu) ** 2, axis=(2, 3), keepdims=True)
    n = (x1 - mu) / jnp.sqrt(var + EPS)
    gn = gn_w[None, :, None, None] * n + gn_b[None, :, None, None]
    x_spatial = x1 * sigmoid(sweight[None, :, None, None] * gn
                             + sbias[None, :, None, None])

    out = jnp.concatenate([x_channel, x_spatial], axis=1).reshape(b, c, h, w)
    # channel_shuffle(out, 2)
    out = out.reshape(b, 2, c // 2, h, w).transpose(0, 2, 1, 3, 4).reshape(b, c, h, w)
    return out


# ================================ main ==================================================
if __name__ == "__main__":
    key = jax.random.PRNGKey(0)
    kx, kp = jax.random.split(key)
    x = jax.random.normal(kx, (B, C, H, W), jnp.float32)
    params = init_params(kp)
    row_params = pack_row_params(params)

    out = shuffle_attention_forward(x, row_params)
    jax.block_until_ready(out)

    ref = shuffle_attention_reference(x, params)
    assert out.shape == (B, C, H, W)
    err = float(np.max(np.abs(np.asarray(out) - np.asarray(ref))))
    if not np.allclose(np.asarray(out), np.asarray(ref), rtol=1e-3, atol=1e-3):
        raise AssertionError("Pallas/reference mismatch, max abs err = %e" % err)
    print("KERNEL_OK")
</pallas_src>

<mosaic_0001>
module attributes {stable_mosaic.version = 11 : i64} {
  func.func @shuffle_attention_kernel(%arg0: i32, %arg1: memref<2x32x256xf32, #tpu.memory_space<vmem>>, %arg2: memref<1x32x128xf32, #tpu.memory_space<vmem>>, %arg3: memref<2x32x256xf32, #tpu.memory_space<vmem>>) attributes {dimension_semantics = [#tpu.dimension_semantics<parallel>], iteration_bounds = array<i64: 2>, scalar_prefetch = 0 : i64, scratch_operands = 0 : i64, tpu.core_type = #tpu.core_type<tc>, window_params = [{transform_indices = @transform_0, window_bounds = array<i64: 2, 32, 256>}, {transform_indices = @transform_1, window_bounds = array<i64: 1, 32, 128>}, {transform_indices = @transform_2, window_bounds = array<i64: 2, 32, 256>}]} {
    %c0 = arith.constant 0 : index
    %c0_0 = arith.constant 0 : index
    %c0_1 = arith.constant 0 : index
    %0 = vector.load %arg1[%c0, %c0_0, %c0_1] : memref<2x32x256xf32, #tpu.memory_space<vmem>>, vector<2x32x256xf32>
    %c0_2 = arith.constant 0 : index
    %c0_3 = arith.constant 0 : index
    %c0_4 = arith.constant 0 : index
    %1 = vector.load %arg2[%c0_2, %c0_3, %c0_4] : memref<1x32x128xf32, #tpu.memory_space<vmem>>, vector<1x32x1xf32>
    %2 = vector.shape_cast %1 : vector<1x32x1xf32> to vector<32x1xf32>
    %3 = vector.shape_cast %2 : vector<32x1xf32> to vector<1x32x1xf32>
    %c0_5 = arith.constant 0 : index
    %c0_6 = arith.constant 0 : index
    %c1 = arith.constant 1 : index
    %4 = vector.load %arg2[%c0_5, %c0_6, %c1] : memref<1x32x128xf32, #tpu.memory_space<vmem>>, vector<1x32x1xf32>
    %5 = vector.shape_cast %4 : vector<1x32x1xf32> to vector<32x1xf32>
    %6 = vector.shape_cast %5 : vector<32x1xf32> to vector<1x32x1xf32>
    %c0_7 = arith.constant 0 : index
    %c0_8 = arith.constant 0 : index
    %c2 = arith.constant 2 : index
    %7 = vector.load %arg2[%c0_7, %c0_8, %c2] : memref<1x32x128xf32, #tpu.memory_space<vmem>>, vector<1x32x1xf32>
    %8 = vector.shape_cast %7 : vector<1x32x1xf32> to vector<32x1xf32>
    %9 = vector.shape_cast %8 : vector<32x1xf32> to vector<1x32x1xf32>
    %cst = arith.constant dense<0.000000e+00> : vector<2x32xf32>
    %10 = vector.multi_reduction <add>, %0, %cst [2] : vector<2x32x256xf32> to vector<2x32xf32>
    %11 = vector.shape_cast %10 : vector<2x32xf32> to vector<2x32x1xf32>
    %cst_9 = arith.constant 2.560000e+02 : f32
    %12 = vector.broadcast %cst_9 : f32 to vector<2x32x1xf32>
    %13 = arith.divf %11, %12 : vector<2x32x1xf32>
    %14 = vector.broadcast %13 : vector<2x32x1xf32> to vector<2x32x256xf32>
    %15 = arith.subf %0, %14 : vector<2x32x256xf32>
    %16 = arith.mulf %15, %15 : vector<2x32x256xf32>
    %cst_10 = arith.constant dense<0.000000e+00> : vector<2x32xf32>
    %17 = vector.multi_reduction <add>, %16, %cst_10 [2] : vector<2x32x256xf32> to vector<2x32xf32>
    %18 = vector.shape_cast %17 : vector<2x32xf32> to vector<2x32x1xf32>
    %cst_11 = arith.constant 2.560000e+02 : f32
    %19 = vector.broadcast %cst_11 : f32 to vector<2x32x1xf32>
    %20 = arith.divf %18, %19 : vector<2x32x1xf32>
    %cst_12 = arith.constant 9.99999974E-6 : f32
    %21 = vector.broadcast %cst_12 : f32 to vector<2x32x1xf32>
    %22 = arith.addf %20, %21 : vector<2x32x1xf32>
    %23 = math.rsqrt %22 : vector<2x32x1xf32>
    %24 = vector.broadcast %3 : vector<1x32x1xf32> to vector<2x32x1xf32>
    %25 = arith.mulf %24, %23 : vector<2x32x1xf32>
    %26 = vector.broadcast %25 : vector<2x32x1xf32> to vector<2x32x256xf32>
    %27 = arith.mulf %26, %15 : vector<2x32x256xf32>
    %28 = vector.broadcast %6 : vector<1x32x1xf32> to vector<2x32x1xf32>
    %29 = arith.mulf %28, %13 : vector<2x32x1xf32>
    %30 = vector.broadcast %29 : vector<2x32x1xf32> to vector<2x32x256xf32>
    %31 = arith.addf %27, %30 : vector<2x32x256xf32>
    %32 = vector.broadcast %9 : vector<1x32x1xf32> to vector<2x32x256xf32>
    %33 = arith.addf %31, %32 : vector<2x32x256xf32>
    %cst_13 = arith.constant 0.000000e+00 : f32
    %34 = vector.broadcast %cst_13 : f32 to vector<2x32x256xf32>
    %35 = arith.subf %34, %33 : vector<2x32x256xf32>
    %36 = math.exp %35 : vector<2x32x256xf32>
    %cst_14 = arith.constant 1.000000e+00 : f32
    %37 = vector.broadcast %cst_14 : f32 to vector<2x32x256xf32>
    %38 = arith.addf %37, %36 : vector<2x32x256xf32>
    %cst_15 = arith.constant 1.000000e+00 : f32
    %39 = vector.broadcast %cst_15 : f32 to vector<2x32x256xf32>
    %40 = arith.divf %39, %38 : vector<2x32x256xf32>
    %41 = arith.mulf %0, %40 : vector<2x32x256xf32>
    %c0_16 = arith.constant 0 : index
    %c0_17 = arith.constant 0 : index
    %c0_18 = arith.constant 0 : index
    %42 = vector.load %arg3[%c0_16, %c0_17, %c0_18] : memref<2x32x256xf32, #tpu.memory_space<vmem>>, vector<2x32x256xf32>
    tpu.vector_store %arg3[%c0_16, %c0_17, %c0_18], %41 {strides = array<i32>} : memref<2x32x256xf32, #tpu.memory_space<vmem>>, vector<2x32x256xf32>,
    return
  }
  func.func @transform_0(%arg0: i32) -> (i32, i32, i32) {
    %c0_i32 = arith.constant 0 : i32
    %c0_i32_0 = arith.constant 0 : i32
    %c0_i32_1 = arith.constant 0 : i32
    return %c0_i32, %arg0, %c0_i32_0 : i32, i32, i32
  }
  func.func @transform_1(%arg0: i32) -> (i32, i32, i32) {
    %c0_i32 = arith.constant 0 : i32
    %c0_i32_0 = arith.constant 0 : i32
    %c0_i32_1 = arith.constant 0 : i32
    return %arg0, %c0_i32, %c0_i32_0 : i32, i32, i32
  }
  func.func @transform_2(%arg0: i32) -> (i32, i32, i32) {
    %c0_i32 = arith.constant 0 : i32
    %c0_i32_0 = arith.constant 0 : i32
    %c0_i32_1 = arith.constant 0 : i32
    return %c0_i32, %c0_i32_0, %arg0 : i32, i32, i32
  }
}

</mosaic_0001>

<llo_original>
// kernel: shuffle_attention_forward.1
$region0: #{shuffle_attention_forward.1}
  #allocation0 [shape = 'u32[]', space=smem, size = 0x4, offset = 0x4, fixed_abs, tag = 'smem constant byte address 0x4 - core index']
  #allocation1 [shape = 'u32[72,128]{1,0:T(1,128)}', space=vmem, size = 0x9000, scoped, tag = 'internal scratch']
  %s0 = inlined_call_operand.vmem [shape: f32[2,64,256], index: 0, kind: input, shape index: {}]
  %s1 = inlined_call_operand.vmem [shape: f32[2,32,128], index: 1, kind: input, shape index: {}]
  %s2 = inlined_call_operand.vmem [shape: f32[2,32,512], index: 2, kind: output, shape index: {}]
  %s3 = sld [smem:[#allocation0]]
  $region83: #{shuffle_attention_forward.1} parent=0
    _
  %s5 = ssub.s32 1, %s3
  %s6 = scalar_select 0, %s5, %s3
  $region1: #{shuffle_attention_forward.1} parent=0
    #allocation2 [shape = 'u8[131072]{0}', space=vmem, size = 0x20000, scoped, tag = 'input window, operand 0']
    #allocation3 [shape = 'u8[131072]{0}', space=vmem, size = 0x20000, scoped, tag = 'output window, operand 0']
    loop: start=0, step=1, limit=4
    $region2: #{shuffle_attention_forward.1} parent=1 // loop_pre_header
      _
    $region3: #{shuffle_attention_forward.1} parent=1 // loop_header
      %s8 = sphi 0, %s12
      %p9 = scmp.ge.s32.totalorder %s8, 4
      %s18 = sphi 0, %s20
      %s21 = sphi 0, %s18
      %s22 = sphi 0, %s21
      %s38 = sphi 0, %s22
      %s44 = sphi 0, %s46
      %s47 = sphi 0, %s44
      %s48 = sphi 0, %s47
      %s64 = sphi 0, %s48
      %s70 = sphi 0, %s72
      %s73 = sphi 0, %s70
      %s74 = sphi 0, %s73
      %s90 = sphi 0, %s74
    $region4: #{shuffle_attention_forward.1} parent=1 // loop_header_branch
      %11 = sbr.rel (%p9) target = $region8
    $region5: #{shuffle_attention_forward.1} parent=1 // loop_body
      %s13 = ssub.s32 %s8, 1
      %s14 = ssub.s32 %s8, 2
      %s15 = sadd.s32 %s8, 1
      %s16 = ssub.s32 %s8, %s15
      %p17 = scmp.eq.s32.totalorder %s16, 0
      %s19 = sadd.s32 %s18, 1
      %s20 = scalar_select %p17, %s18, %s19
      %p23 = pneg %p17
      %p24 = scmp.eq.s32.totalorder %s8, 1
      %p25 = por %p23, %p24
      %p26 = scmp.ne.s32.totalorder %s18, %s21
      %p27 = scmp.eq.s32.totalorder %s8, 0
      %p28 = por %p26, %p27
      %p29 = scmp.ne.s32.totalorder %s18, %s21
      %p30 = scmp.eq.s32.totalorder %s13, 1
      %p31 = por %p29, %p30
      %p32 = scmp.ne.s32.totalorder %s21, %s22
      %p33 = scmp.eq.s32.totalorder %s13, 0
      %p34 = por %p32, %p33
      %p35 = scmp.ne.s32.totalorder %s21, %s22
      %p36 = scmp.eq.s32.totalorder %s14, 1
      %p37 = por %p35, %p36
      %p39 = scmp.ne.s32.totalorder %s22, %s38
      %p40 = scmp.eq.s32.totalorder %s14, 0
      %p41 = por %p39, %p40
      %s42 = ssub.s32 %s8, %s15
      %p43 = scmp.eq.s32.totalorder %s42, 0
      %s45 = sadd.s32 %s44, 1
      %s46 = scalar_select %p43, %s44, %s45
      %p49 = pneg %p43
      %p50 = scmp.eq.s32.totalorder %s8, 1
      %p51 = por %p49, %p50
      %p52 = scmp.ne.s32.totalorder %s44, %s47
      %p53 = scmp.eq.s32.totalorder %s8, 0
      %p54 = por %p52, %p53
      %p55 = scmp.ne.s32.totalorder %s44, %s47
      %p56 = scmp.eq.s32.totalorder %s13, 1
      %p57 = por %p55, %p56
      %p58 = scmp.ne.s32.totalorder %s47, %s48
      %p59 = scmp.eq.s32.totalorder %s13, 0
      %p60 = por %p58, %p59
      %p61 = scmp.ne.s32.totalorder %s47, %s48
      %p62 = scmp.eq.s32.totalorder %s14, 1
      %p63 = por %p61, %p62
      %p65 = scmp.ne.s32.totalorder %s48, %s64
      %p66 = scmp.eq.s32.totalorder %s14, 0
      %p67 = por %p65, %p66
      %s68 = ssub.s32 %s8, %s15
      %p69 = scmp.eq.s32.totalorder %s68, 0
      %s71 = sadd.s32 %s70, 1
      %s72 = scalar_select %p69, %s70, %s71
      %p75 = pneg %p69
      %p76 = scmp.eq.s32.totalorder %s8, 1
      %p77 = por %p75, %p76
      %p78 = scmp.ne.s32.totalorder %s70, %s73
      %p79 = scmp.eq.s32.totalorder %s8, 0
      %p80 = por %p78, %p79
      %p81 = scmp.ne.s32.totalorder %s70, %s73
      %p82 = scmp.eq.s32.totalorder %s13, 1
      %p83 = por %p81, %p82
      %p84 = scmp.ne.s32.totalorder %s73, %s74
      %p85 = scmp.eq.s32.totalorder %s13, 0
      %p86 = por %p84, %p85
      %p87 = scmp.ne.s32.totalorder %s73, %s74
      %p88 = scmp.eq.s32.totalorder %s14, 1
      %p89 = por %p87, %p88
      %p91 = scmp.ne.s32.totalorder %s74, %s90
      %p92 = scmp.eq.s32.totalorder %s14, 0
      %p93 = por %p91, %p92
      %p94 = scmp.le.s32.totalorder 1, %s8
      %p95 = scmp.lt.s32.totalorder %s8, 3
      %p96 = pnand %p94, %p95
      %p97 = pneg %p96
      // Predicated region
      $region9: #{shuffle_attention_forward.1} parent=5 // pred_check
        _
      $region10: #{shuffle_attention_forward.1} parent=5 // pred_check_branch
        %99 = sbr.rel (%p96) target = $region12
      $region11: #{shuffle_attention_forward.1} parent=5 // pred_region
        %s100 = ssub.s32 %s8, 1
      $region12: #{shuffle_attention_forward.1} parent=5 // pred_fallthru
        _
      %p101 = scmp.lt.s32.totalorder %s8, 2
      // Predicated region
      $region13: #{shuffle_attention_forward.1} parent=5 // pred_check
        %p102 = pneg %p101
      $region14: #{shuffle_attention_forward.1} parent=5 // pred_check_branch
        %104 = sbr.rel (%p102) target = $region16
      $region15: #{shuffle_attention_forward.1} parent=5 // pred_region
        // Predicated region
        $region17: #{shuffle_attention_forward.1} parent=15 // pred_check
          %p105 = pneg %p28
        $region18: #{shuffle_attention_forward.1} parent=15 // pred_check_branch
          %107 = sbr.rel (%p105) target = $region20
        $region19: #{shuffle_attention_forward.1} parent=15 // pred_region
          %s108 = sand.u32 %s18, 1
          %s109 = sand.u32 %s18, 1
          %s110 = smul.addr %s109, 128
          %s111 = scalar_lea.vmem [#allocation2], %s110
          %s112 = smul.u32 4, %s8
          %s113 = smul.addr %s112, 2
          %s114 = smul.addr %s113, 8
          %s115 = scalar_lea.vmem %s0, %s114
          // Predicated region
          $region21: #{shuffle_attention_forward.1} parent=19 // pred_check
            _
          $region22: #{shuffle_attention_forward.1} parent=19 // pred_check_branch
            %117 = sbr.rel (0) target = $region24
          $region23: #{shuffle_attention_forward.1} parent=19 // pred_region
            // Predicated region
            $region25: #{shuffle_attention_forward.1} parent=23 // pred_check
              _
            $region26: #{shuffle_attention_forward.1} parent=23 // pred_check_branch
              %119 = sbr.rel (0) target = $region28
            $region27: #{shuffle_attention_forward.1} parent=23 // pred_region
              loop: start=0, step=1, limit=1
              $region29: #{shuffle_attention_forward.1} parent=27 // loop_pre_header
                _
              $region30: #{shuffle_attention_forward.1} parent=27 // loop_header
                %s121 = sphi 0, %s125
                %p122 = scmp.ge.s32.totalorder %s121, 1
                %s126 = sphi %s115, %s115
                %s127 = sphi %s111, %s111
              $region31: #{shuffle_attention_forward.1} parent=27 // loop_header_branch
                %124 = sbr.rel (%p122) target = $region35
              $region32: #{shuffle_attention_forward.1} parent=27 // loop_body
                %v128 = vld [vmem:[%s126] sm:$0xff]
                %129 = vst [vmem:[%s127] sm:$0xff] %v128
                %v130 = vld [vmem:[%s126 + $0x8] sm:$0xff]
                %131 = vst [vmem:[%s127 + $0x8] sm:$0xff] %v130
                %v132 = vld [vmem:[%s126 + $0x10] sm:$0xff]
                %133 = vst [vmem:[%s127 + $0x10] sm:$0xff] %v132
                %v134 = vld [vmem:[%s126 + $0x18] sm:$0xff]
                %135 = vst [vmem:[%s127 + $0x18] sm:$0xff] %v134
                %v136 = vld [vmem:[%s126 + $0x20] sm:$0xff]
                %137 = vst [vmem:[%s127 + $0x20] sm:$0xff] %v136
                %v138 = vld [vmem:[%s126 + $0x28] sm:$0xff]
                %139 = vst [vmem:[%s127 + $0x28] sm:$0xff] %v138
                %v140 = vld [vmem:[%s126 + $0x30] sm:$0xff]
                %141 = vst [vmem:[%s127 + $0x30] sm:$0xff] %v140
                %v142 = vld [vmem:[%s126 + $0x38] sm:$0xff]
                %143 = vst [vmem:[%s127 + $0x38] sm:$0xff] %v142
                %v144 = vld [vmem:[%s126 + $0x80] sm:$0xff]
                %145 = vst [vmem:[%s127 + $0x40] sm:$0xff] %v144
                %v146 = vld [vmem:[%s126 + $0x88] sm:$0xff]
                %147 = vst [vmem:[%s127 + $0x48] sm:$0xff] %v146
                %v148 = vld [vmem:[%s126 + $0x90] sm:$0xff]
                %149 = vst [vmem:[%s127 + $0x50] sm:$0xff] %v148
                %v150 = vld [vmem:[%s126 + $0x98] sm:$0xff]
                %151 = vst [vmem:[%s127 + $0x58] sm:$0xff] %v150
                %v152 = vld [vmem:[%s126 + $0xa0] sm:$0xff]
                %153 = vst [vmem:[%s127 + $0x60] sm:$0xff] %v152
                %v154 = vld [vmem:[%s126 + $0xa8] sm:$0xff]
                %155 = vst [vmem:[%s127 + $0x68] sm:$0xff] %v154
                %v156 = vld [vmem:[%s126 + $0xb0] sm:$0xff]
                %157 = vst [vmem:[%s127 + $0x70] sm:$0xff] %v156
                %v158 = vld [vmem:[%s126 + $0xb8] sm:$0xff]
                %159 = vst [vmem:[%s127 + $0x78] sm:$0xff] %v158
              $region33: #{shuffle_attention_forward.1} parent=27 // loop_footer
                %s125 = sadd.s32 1, %s121
              $region34: #{shuffle_attention_forward.1} parent=27 // loop_footer_branch
                %120 = sbr.rel target = $region30
              $region35: #{shuffle_attention_forward.1} parent=27 // loop_exit
                _
            $region28: #{shuffle_attention_forward.1} parent=23 // pred_fallthru
              _
            // Predicated region
            $region36: #{shuffle_attention_forward.1} parent=23 // pred_check
              _
            $region37: #{shuffle_attention_forward.1} parent=23 // pred_check_branch
              %161 = sbr.rel target = $region39
            $region38: #{shuffle_attention_forward.1} parent=23 // pred_region
              _
            $region39: #{shuffle_attention_forward.1} parent=23 // pred_fallthru
              _
          $region24: #{shuffle_attention_forward.1} parent=19 // pred_fallthru
            _
          %162 = vnop
        $region20: #{shuffle_attention_forward.1} parent=15 // pred_fallthru
          _
        // Predicated region
        $region40: #{shuffle_attention_forward.1} parent=15 // pred_check
          %p163 = pneg %p54
        $region41: #{shuffle_attention_forward.1} parent=15 // pred_check_branch
          %165 = sbr.rel (%p163) target = $region43
        $region42: #{shuffle_attention_forward.1} parent=15 // pred_region
          %p166 = scmp.lt.s32.totalorder %s8, 1
          %s167 = scalar_select %p166, %s8, 1
          %s168 = smul.addr %s167, 4
          %s169 = smul.addr %s168, 8
          %s170 = scalar_lea.vmem %s1, %s169
        $region43: #{shuffle_attention_forward.1} parent=15 // pred_fallthru
          _
      $region16: #{shuffle_attention_forward.1} parent=5 // pred_fallthru
        _
      %p171 = scmp.le.s32.totalorder 1, %s8
      %p172 = scmp.lt.s32.totalorder %s8, 3
      %p173 = pnand %p171, %p172
      %p174 = pneg %p173
      // Predicated region
      $region44: #{shuffle_attention_forward.1} parent=5 // pred_check
        _
      $region45: #{shuffle_attention_forward.1} parent=5 // pred_check_branch
        %176 = sbr.rel (%p173) target = $region47
      $region46: #{shuffle_attention_forward.1} parent=5 // pred_region
        %s177 = ssub.s32 %s8, 1
        %s178 = sand.u32 %s21, 1
        %s179 = sand.u32 %s21, 1
        %s180 = smul.addr %s179, 128
        %s181 = scalar_lea.vmem [#allocation2], %s180
        // Predicated region
        $region48: #{shuffle_attention_forward.1} parent=46 // pred_check
          %p182 = pneg %p34
        $region49: #{shuffle_attention_forward.1} parent=46 // pred_check_branch
          %184 = sbr.rel (%p182) target = $region51
        $region50: #{shuffle_attention_forward.1} parent=46 // pred_region
          _
        $region51: #{shuffle_attention_forward.1} parent=46 // pred_fallthru
          _
        %s185 = sand.u32 %s21, 1
        %s186 = sand.u32 %s21, 1
        %s187 = smul.addr %s186, 128
        %s188 = scalar_lea.vmem [#allocation2], %s187
        %p189 = pneg %p34
        %p190 = pneg %p31
        %p191 = scmp.lt.s32.totalorder %s13, 1
        %s192 = scalar_select %p191, %s13, 1
        %s193 = smul.addr %s192, 4
        %s194 = smul.addr %s193, 8
        %s195 = scalar_lea.vmem %s1, %s194
        %p196 = pneg %p60
        %p197 = pneg %p57
        %p198 = pneg %p86
        %p199 = pneg %p83
        %s200 = sand.u32 %s73, 1
        %s201 = sand.u32 %s73, 1
        %s202 = smul.addr %s201, 128
        %s203 = scalar_lea.vmem [#allocation3], %s202
        %s204 = smul.u32 4, %s13
        %p205 = scmp.lt.s32.totalorder %s13, 1
        %s206 = scalar_select %p205, %s13, 1
        %s207 = smul.addr %s206, 4
        %s208 = smul.addr %s207, 8
        %s209 = scalar_lea.vmem %s1, %s208
        %s210 = smul.u32 2, %s13
        %v211 = vld [vmem:[%s181] sm:$0xff]
        %v212 = vld [vmem:[%s181 + $0x8] sm:$0xff]
        %v213 = vld [vmem:[%s181 + $0x10] sm:$0xff]
        %v214 = vld [vmem:[%s181 + $0x18] sm:$0xff]
        %v215 = vld [vmem:[%s181 + $0x20] sm:$0xff]
        %v216 = vld [vmem:[%s181 + $0x28] sm:$0xff]
        %v217 = vld [vmem:[%s181 + $0x30] sm:$0xff]
        %v218 = vld [vmem:[%s181 + $0x38] sm:$0xff]
        %v219 = vld [vmem:[%s181 + $0x40] sm:$0xff]
        %v220 = vld [vmem:[%s181 + $0x48] sm:$0xff]
        %v221 = vld [vmem:[%s181 + $0x50] sm:$0xff]
        %v222 = vld [vmem:[%s181 + $0x58] sm:$0xff]
        %v223 = vld [vmem:[%s181 + $0x60] sm:$0xff]
        %v224 = vld [vmem:[%s181 + $0x68] sm:$0xff]
        %v225 = vld [vmem:[%s181 + $0x70] sm:$0xff]
        %v226 = vld [vmem:[%s181 + $0x78] sm:$0xff]
        %v227 = vld [vmem:[%s209] sm:$0xff]
        %v228 = vld [vmem:[%s209 + $0x8] sm:$0xff]
        %v229 = vld [vmem:[%s209 + $0x10] sm:$0xff]
        %v230 = vld [vmem:[%s209 + $0x18] sm:$0xff]
        %v231 = vadd.f32 %v211, %v212
        %232 = vadd.xlane.f32.xlu0 %v231
        %v233 = vpop.xlane.xlu0 %232
        %v234 = vadd.f32 %v213, %v214
        %235 = vadd.xlane.f32.xlu0 %v234
        %v236 = vpop.xlane.xlu0 %235
        %v237 = vadd.f32 %v215, %v216
        %238 = vadd.xlane.f32.xlu0 %v237
        %v239 = vpop.xlane.xlu0 %238
        %v240 = vadd.f32 %v217, %v218
        %241 = vadd.xlane.f32.xlu0 %v240
        %v242 = vpop.xlane.xlu0 %241
        %v243 = vadd.f32 %v219, %v220
        %244 = vadd.xlane.f32.xlu0 %v243
        %v245 = vpop.xlane.xlu0 %244
        %v246 = vadd.f32 %v221, %v222
        %247 = vadd.xlane.f32.xlu0 %v246
        %v248 = vpop.xlane.xlu0 %247
        %v249 = vadd.f32 %v223, %v224
        %250 = vadd.xlane.f32.xlu0 %v249
        %v251 = vpop.xlane.xlu0 %250
        %v252 = vadd.f32 %v225, %v226
        %253 = vadd.xlane.f32.xlu0 %v252
        %v254 = vpop.xlane.xlu0 %253
        %v255 = vrcp.pop 256.0
        %v256 = vmul.f32 256.0, %v255
        %v257 = vsub.f32 1.0, %v256
        %v258 = vmul.f32 %v255, %v257
        %v259 = vadd.f32 %v255, %v258
        %vm260 = vweird.f32 %v255
        %v261 = vsel %vm260, %v255, %v259
        %v262 = vmul.f32 %v233, %v261
        %v263 = vmul.f32 %v236, %v261
        %v264 = vmul.f32 %v239, %v261
        %v265 = vmul.f32 %v242, %v261
        %v266 = vmul.f32 %v245, %v261
        %v267 = vmul.f32 %v248, %v261
        %v268 = vmul.f32 %v251, %v261
        %v269 = vmul.f32 %v254, %v261
        %v270 = vsub.f32 %v211, %v262
        %v271 = vsub.f32 %v212, %v262
        %v272 = vsub.f32 %v213, %v263
        %v273 = vsub.f32 %v214, %v263
        %v274 = vsub.f32 %v215, %v264
        %v275 = vsub.f32 %v216, %v264
        %v276 = vsub.f32 %v217, %v265
        %v277 = vsub.f32 %v218, %v265
        %v278 = vsub.f32 %v219, %v266
        %v279 = vsub.f32 %v220, %v266
        %v280 = vsub.f32 %v221, %v267
        %v281 = vsub.f32 %v222, %v267
        %v282 = vsub.f32 %v223, %v268
        %v283 = vsub.f32 %v224, %v268
        %v284 = vsub.f32 %v225, %v269
        %v285 = vsub.f32 %v226, %v269
        %v286 = vmul.f32 %v270, %v270
        %v287 = vmul.f32 %v271, %v271
        %v288 = vmul.f32 %v272, %v272
        %v289 = vmul.f32 %v273, %v273
        %v290 = vmul.f32 %v274, %v274
        %v291 = vmul.f32 %v275, %v275
        %v292 = vmul.f32 %v276, %v276
        %v293 = vmul.f32 %v277, %v277
        %v294 = vmul.f32 %v278, %v278
        %v295 = vmul.f32 %v279, %v279
        %v296 = vmul.f32 %v280, %v280
        %v297 = vmul.f32 %v281, %v281
        %v298 = vmul.f32 %v282, %v282
        %v299 = vmul.f32 %v283, %v283
        %v300 = vmul.f32 %v284, %v284
        %v301 = vmul.f32 %v285, %v285
        %v302 = vadd.f32 %v286, %v287
        %303 = vadd.xlane.f32.xlu0 %v302
        %v304 = vpop.xlane.xlu0 %303
        %v305 = vadd.f32 %v288, %v289
        %306 = vadd.xlane.f32.xlu0 %v305
        %v307 = vpop.xlane.xlu0 %306
        %v308 = vadd.f32 %v290, %v291
        %309 = vadd.xlane.f32.xlu0 %v308
        %v310 = vpop.xlane.xlu0 %309
        %v311 = vadd.f32 %v292, %v293
        %312 = vadd.xlane.f32.xlu0 %v311
        %v313 = vpop.xlane.xlu0 %312
        %v314 = vadd.f32 %v294, %v295
        %315 = vadd.xlane.f32.xlu0 %v314
        %v316 = vpop.xlane.xlu0 %315
        %v317 = vadd.f32 %v296, %v297
        %318 = vadd.xlane.f32.xlu0 %v317
        %v319 = vpop.xlane.xlu0 %318
        %v320 = vadd.f32 %v298, %v299
        %321 = vadd.xlane.f32.xlu0 %v320
        %v322 = vpop.xlane.xlu0 %321
        %v323 = vadd.f32 %v300, %v301
        %324 = vadd.xlane.f32.xlu0 %v323
        %v325 = vpop.xlane.xlu0 %324
        %v326 = vmul.f32 %v304, %v261
        %v327 = vmul.f32 %v307, %v261
        %v328 = vmul.f32 %v310, %v261
        %v329 = vmul.f32 %v313, %v261
        %v330 = vmul.f32 %v316, %v261
        %v331 = vmul.f32 %v319, %v261
        %v332 = vmul.f32 %v322, %v261
        %v333 = vmul.f32 %v325, %v261
        %v334 = vadd.f32 %v326, 1e-05
        %v335 = vadd.f32 %v327, 1e-05
        %v336 = vadd.f32 %v328, 1e-05
        %v337 = vadd.f32 %v329, 1e-05
        %v338 = vadd.f32 %v330, 1e-05
        %v339 = vadd.f32 %v331, 1e-05
        %v340 = vadd.f32 %v332, 1e-05
        %v341 = vadd.f32 %v333, 1e-05
        %v342 = vrsqrt.pop %v334
        %v343 = vmul.f32 %v342, %v334
        %v344 = vmul.f32 %v343, %v342
        %v345 = vmul.f32 0.5, %v344
        %v346 = vsub.f32 1.5, %v345
        %v347 = vmul.f32 %v342, %v346
        %vm348 = vweird.f32 %v334
        %vm349 = vweird.f32 %v342
        %vm350 = vmor %vm348, %vm349
        %v351 = vsel %vm350, %v342, %v347
        %v352 = vrsqrt.pop %v335
        %v353 = vmul.f32 %v352, %v335
        %v354 = vmul.f32 %v353, %v352
        %v355 = vmul.f32 0.5, %v354
        %v356 = vsub.f32 1.5, %v355
        %v357 = vmul.f32 %v352, %v356
        %vm358 = vweird.f32 %v335
        %vm359 = vweird.f32 %v352
        %vm360 = vmor %vm358, %vm359
        %v361 = vsel %vm360, %v352, %v357
        %v362 = vrsqrt.pop %v336
        %v363 = vmul.f32 %v362, %v336
        %v364 = vmul.f32 %v363, %v362
        %v365 = vmul.f32 0.5, %v364
        %v366 = vsub.f32 1.5, %v365
        %v367 = vmul.f32 %v362, %v366
        %vm368 = vweird.f32 %v336
        %vm369 = vweird.f32 %v362
        %vm370 = vmor %vm368, %vm369
        %v371 = vsel %vm370, %v362, %v367
        %v372 = vrsqrt.pop %v337
        %v373 = vmul.f32 %v372, %v337
        %v374 = vmul.f32 %v373, %v372
        %v375 = vmul.f32 0.5, %v374
        %v376 = vsub.f32 1.5, %v375
        %v377 = vmul.f32 %v372, %v376
        %vm378 = vweird.f32 %v337
        %vm379 = vweird.f32 %v372
        %vm380 = vmor %vm378, %vm379
        %v381 = vsel %vm380, %v372, %v377
        %v382 = vrsqrt.pop %v338
        %v383 = vmul.f32 %v382, %v338
        %v384 = vmul.f32 %v383, %v382
        %v385 = vmul.f32 0.5, %v384
        %v386 = vsub.f32 1.5, %v385
        %v387 = vmul.f32 %v382, %v386
        %vm388 = vweird.f32 %v338
        %vm389 = vweird.f32 %v382
        %vm390 = vmor %vm388, %vm389
        %v391 = vsel %vm390, %v382, %v387
        %v392 = vrsqrt.pop %v339
        %v393 = vmul.f32 %v392, %v339
        %v394 = vmul.f32 %v393, %v392
        %v395 = vmul.f32 0.5, %v394
        %v396 = vsub.f32 1.5, %v395
        %v397 = vmul.f32 %v392, %v396
        %vm398 = vweird.f32 %v339
        %vm399 = vweird.f32 %v392
        %vm400 = vmor %vm398, %vm399
        %v401 = vsel %vm400, %v392, %v397
        %v402 = vrsqrt.pop %v340
        %v403 = vmul.f32 %v402, %v340
        %v404 = vmul.f32 %v403, %v402
        %v405 = vmul.f32 0.5, %v404
        %v406 = vsub.f32 1.5, %v405
        %v407 = vmul.f32 %v402, %v406
        %vm408 = vweird.f32 %v340
        %vm409 = vweird.f32 %v402
        %vm410 = vmor %vm408, %vm409
        %v411 = vsel %vm410, %v402, %v407
        %v412 = vrsqrt.pop %v341
        %v413 = vmul.f32 %v412, %v341
        %v414 = vmul.f32 %v413, %v412
        %v415 = vmul.f32 0.5, %v414
        %v416 = vsub.f32 1.5, %v415
        %v417 = vmul.f32 %v412, %v416
        %vm418 = vweird.f32 %v341
        %vm419 = vweird.f32 %v412
        %vm420 = vmor %vm418, %vm419
        %v421 = vsel %vm420, %v412, %v417
        %v422 = vmul.f32 %v227, %v351
        %v423 = vmul.f32 %v228, %v361
        %v424 = vmul.f32 %v229, %v371
        %v425 = vmul.f32 %v230, %v381
        %v426 = vmul.f32 %v227, %v391
        %v427 = vmul.f32 %v228, %v401
        %v428 = vmul.f32 %v229, %v411
        %v429 = vmul.f32 %v230, %v421
        %431 = vset.pattern.permute.xlu0 0
        %432 = vperm.xlu0 %431, %v422
        %v433 = vpop.permute.xlu0 %432
        %436 = vset.pattern.permute.xlu0 0
        %437 = vperm.xlu0 %436, %v423
        %v438 = vpop.permute.xlu0 %437
        %441 = vset.pattern.permute.xlu0 0
        %442 = vperm.xlu0 %441, %v424
        %v443 = vpop.permute.xlu0 %442
        %446 = vset.pattern.permute.xlu0 0
        %447 = vperm.xlu0 %446, %v425
        %v448 = vpop.permute.xlu0 %447
        %451 = vset.pattern.permute.xlu0 0
        %452 = vperm.xlu0 %451, %v426
        %v453 = vpop.permute.xlu0 %452
        %456 = vset.pattern.permute.xlu0 0
        %457 = vperm.xlu0 %456, %v427
        %v458 = vpop.permute.xlu0 %457
        %461 = vset.pattern.permute.xlu0 0
        %462 = vperm.xlu0 %461, %v428
        %v463 = vpop.permute.xlu0 %462
        %466 = vset.pattern.permute.xlu0 0
        %467 = vperm.xlu0 %466, %v429
        %v468 = vpop.permute.xlu0 %467
        %v470 = vmul.f32 %v433, %v270
        %v471 = vmul.f32 %v433, %v271
        %v472 = vmul.f32 %v438, %v272
        %v473 = vmul.f32 %v438, %v273
        %v474 = vmul.f32 %v443, %v274
        %v475 = vmul.f32 %v443, %v275
        %v476 = vmul.f32 %v448, %v276
        %v477 = vmul.f32 %v448, %v277
        %v478 = vmul.f32 %v453, %v278
        %v479 = vmul.f32 %v453, %v279
        %v480 = vmul.f32 %v458, %v280
        %v481 = vmul.f32 %v458, %v281
        %v482 = vmul.f32 %v463, %v282
        %v483 = vmul.f32 %v463, %v283
        %v484 = vmul.f32 %v468, %v284
        %v485 = vmul.f32 %v468, %v285
        %v486 = vmul.f32 %v227, %v262
        %v487 = vmul.f32 %v228, %v263
        %v488 = vmul.f32 %v229, %v264
        %v489 = vmul.f32 %v230, %v265
        %v490 = vmul.f32 %v227, %v266
        %v491 = vmul.f32 %v228, %v267
        %v492 = vmul.f32 %v229, %v268
        %v493 = vmul.f32 %v230, %v269
        %495 = vset.pattern.permute.xlu0 1
        %496 = vperm.xlu0 %495, %v486
        %v497 = vpop.permute.xlu0 %496
        %500 = vset.pattern.permute.xlu0 1
        %501 = vperm.xlu0 %500, %v487
        %v502 = vpop.permute.xlu0 %501
        %505 = vset.pattern.permute.xlu0 1
        %506 = vperm.xlu0 %505, %v488
        %v507 = vpop.permute.xlu0 %506
        %510 = vset.pattern.permute.xlu0 1
        %511 = vperm.xlu0 %510, %v489
        %v512 = vpop.permute.xlu0 %511
        %515 = vset.pattern.permute.xlu0 1
        %516 = vperm.xlu0 %515, %v490
        %v517 = vpop.permute.xlu0 %516
        %520 = vset.pattern.permute.xlu0 1
        %521 = vperm.xlu0 %520, %v491
        %v522 = vpop.permute.xlu0 %521
        %525 = vset.pattern.permute.xlu0 1
        %526 = vperm.xlu0 %525, %v492
        %v527 = vpop.permute.xlu0 %526
        %530 = vset.pattern.permute.xlu0 1
        %531 = vperm.xlu0 %530, %v493
        %v532 = vpop.permute.xlu0 %531
        %v534 = vadd.f32 %v470, %v497
        %v535 = vadd.f32 %v471, %v497
        %v536 = vadd.f32 %v472, %v502
        %v537 = vadd.f32 %v473, %v502
        %v538 = vadd.f32 %v474, %v507
        %v539 = vadd.f32 %v475, %v507
        %v540 = vadd.f32 %v476, %v512
        %v541 = vadd.f32 %v477, %v512
        %v542 = vadd.f32 %v478, %v517
        %v543 = vadd.f32 %v479, %v517
        %v544 = vadd.f32 %v480, %v522
        %v545 = vadd.f32 %v481, %v522
        %v546 = vadd.f32 %v482, %v527
        %v547 = vadd.f32 %v483, %v527
        %v548 = vadd.f32 %v484, %v532
        %v549 = vadd.f32 %v485, %v532
        %551 = vset.pattern.permute.xlu0 2
        %552 = vperm.xlu0 %551, %v227
        %v553 = vpop.permute.xlu0 %552
        %556 = vset.pattern.permute.xlu0 2
        %557 = vperm.xlu0 %556, %v228
        %v558 = vpop.permute.xlu0 %557
        %561 = vset.pattern.permute.xlu0 2
        %562 = vperm.xlu0 %561, %v229
        %v563 = vpop.permute.xlu0 %562
        %566 = vset.pattern.permute.xlu0 2
        %567 = vperm.xlu0 %566, %v230
        %v568 = vpop.permute.xlu0 %567
        %v570 = vadd.f32 %v534, %v553
        %v571 = vadd.f32 %v535, %v553
        %v572 = vadd.f32 %v536, %v558
        %v573 = vadd.f32 %v537, %v558
        %v574 = vadd.f32 %v538, %v563
        %v575 = vadd.f32 %v539, %v563
        %v576 = vadd.f32 %v540, %v568
        %v577 = vadd.f32 %v541, %v568
        %v578 = vadd.f32 %v542, %v553
        %v579 = vadd.f32 %v543, %v553
        %v580 = vadd.f32 %v544, %v558
        %v581 = vadd.f32 %v545, %v558
        %v582 = vadd.f32 %v546, %v563
        %v583 = vadd.f32 %v547, %v563
        %v584 = vadd.f32 %v548, %v568
        %v585 = vadd.f32 %v549, %v568
        %v586 = vsub.f32 0.0, %v570
        %v587 = vsub.f32 0.0, %v571
        %v588 = vsub.f32 0.0, %v572
        %v589 = vsub.f32 0.0, %v573
        %v590 = vsub.f32 0.0, %v574
        %v591 = vsub.f32 0.0, %v575
        %v592 = vsub.f32 0.0, %v576
        %v593 = vsub.f32 0.0, %v577
        %v594 = vsub.f32 0.0, %v578
        %v595 = vsub.f32 0.0, %v579
        %v596 = vsub.f32 0.0, %v580
        %v597 = vsub.f32 0.0, %v581
        %v598 = vsub.f32 0.0, %v582
        %v599 = vsub.f32 0.0, %v583
        %v600 = vsub.f32 0.0, %v584
        %v601 = vsub.f32 0.0, %v585
        %v602 = vmul.f32 %v586, 1.442695
        %v603 = vpow.pop %v602
        %v604 = vmul.f32 %v587, 1.442695
        %v605 = vpow.pop %v604
        %v606 = vmul.f32 %v588, 1.442695
        %v607 = vpow.pop %v606
        %v608 = vmul.f32 %v589, 1.442695
        %v609 = vpow.pop %v608
        %v610 = vmul.f32 %v590, 1.442695
        %v611 = vpow.pop %v610
        %v612 = vmul.f32 %v591, 1.442695
        %v613 = vpow.pop %v612
        %v614 = vmul.f32 %v592, 1.442695
        %v615 = vpow.pop %v614
        %v616 = vmul.f32 %v593, 1.442695
        %v617 = vpow.pop %v616
        %v618 = vmul.f32 %v594, 1.442695
        %v619 = vpow.pop %v618
        %v620 = vmul.f32 %v595, 1.442695
        %v621 = vpow.pop %v620
        %v622 = vmul.f32 %v596, 1.442695
        %v623 = vpow.pop %v622
        %v624 = vmul.f32 %v597, 1.442695
        %v625 = vpow.pop %v624
        %v626 = vmul.f32 %v598, 1.442695
        %v627 = vpow.pop %v626
        %v628 = vmul.f32 %v599, 1.442695
        %v629 = vpow.pop %v628
        %v630 = vmul.f32 %v600, 1.442695
        %v631 = vpow.pop %v630
        %v632 = vmul.f32 %v601, 1.442695
        %v633 = vpow.pop %v632
        %v634 = vadd.f32 %v603, 1.0
        %v635 = vadd.f32 %v605, 1.0
        %v636 = vadd.f32 %v607, 1.0
        %v637 = vadd.f32 %v609, 1.0
        %v638 = vadd.f32 %v611, 1.0
        %v639 = vadd.f32 %v613, 1.0
        %v640 = vadd.f32 %v615, 1.0
        %v641 = vadd.f32 %v617, 1.0
        %v642 = vadd.f32 %v619, 1.0
        %v643 = vadd.f32 %v621, 1.0
        %v644 = vadd.f32 %v623, 1.0
        %v645 = vadd.f32 %v625, 1.0
        %v646 = vadd.f32 %v627, 1.0
        %v647 = vadd.f32 %v629, 1.0
        %v648 = vadd.f32 %v631, 1.0
        %v649 = vadd.f32 %v633, 1.0
        %v650 = vrcp.pop %v634
        %v651 = vmul.f32 %v634, %v650
        %v652 = vsub.f32 1.0, %v651
        %v653 = vmul.f32 %v650, %v652
        %v654 = vadd.f32 %v650, %v653
        %vm655 = vweird.f32 %v634
        %vm656 = vweird.f32 %v650
        %vm657 = vmor %vm655, %vm656
        %v658 = vsel %vm657, %v650, %v654
        %v659 = vand.u32 2147483647, %v634
        %vm660 = vcmp.eq.f32.partialorder %v659, 8.507059e+37
        %v661 = vand.u32 %v634, 2147483648
        %v662 = vor.u32 1.1754944e-38, %v661
        %v663 = vsel %vm660, %v662, %v658
        %v664 = vmul.f32 1.0, %v663
        %v665 = vrcp.pop %v635
        %v666 = vmul.f32 %v635, %v665
        %v667 = vsub.f32 1.0, %v666
        %v668 = vmul.f32 %v665, %v667
        %v669 = vadd.f32 %v665, %v668
        %vm670 = vweird.f32 %v635
        %vm671 = vweird.f32 %v665
        %vm672 = vmor %vm670, %vm671
        %v673 = vsel %vm672, %v665, %v669
        %v674 = vand.u32 2147483647, %v635
        %vm675 = vcmp.eq.f32.partialorder %v674, 8.507059e+37
        %v676 = vand.u32 %v635, 2147483648
        %v677 = vor.u32 1.1754944e-38, %v676
        %v678 = vsel %vm675, %v677, %v673
        %v679 = vmul.f32 1.0, %v678
        %v680 = vrcp.pop %v636
        %v681 = vmul.f32 %v636, %v680
        %v682 = vsub.f32 1.0, %v681
        %v683 = vmul.f32 %v680, %v682
        %v684 = vadd.f32 %v680, %v683
        %vm685 = vweird.f32 %v636
        %vm686 = vweird.f32 %v680
        %vm687 = vmor %vm685, %vm686
        %v688 = vsel %vm687, %v680, %v684
        %v689 = vand.u32 2147483647, %v636
        %vm690 = vcmp.eq.f32.partialorder %v689, 8.507059e+37
        %v691 = vand.u32 %v636, 2147483648
        %v692 = vor.u32 1.1754944e-38, %v691
        %v693 = vsel %vm690, %v692, %v688
        %v694 = vmul.f32 1.0, %v693
        %v695 = vrcp.pop %v637
        %v696 = vmul.f32 %v637, %v695
        %v697 = vsub.f32 1.0, %v696
        %v698 = vmul.f32 %v695, %v697
        %v699 = vadd.f32 %v695, %v698
        %vm700 = vweird.f32 %v637
        %vm701 = vweird.f32 %v695
        %vm702 = vmor %vm700, %vm701
        %v703 = vsel %vm702, %v695, %v699
        %v704 = vand.u32 2147483647, %v637
        %vm705 = vcmp.eq.f32.partialorder %v704, 8.507059e+37
        %v706 = vand.u32 %v637, 2147483648
        %v707 = vor.u32 1.1754944e-38, %v706
        %v708 = vsel %vm705, %v707, %v703
        %v709 = vmul.f32 1.0, %v708
        %v710 = vrcp.pop %v638
        %v711 = vmul.f32 %v638, %v710
        %v712 = vsub.f32 1.0, %v711
        %v713 = vmul.f32 %v710, %v712
        %v714 = vadd.f32 %v710, %v713
        %vm715 = vweird.f32 %v638
        %vm716 = vweird.f32 %v710
        %vm717 = vmor %vm715, %vm716
        %v718 = vsel %vm717, %v710, %v714
        %v719 = vand.u32 2147483647, %v638
        %vm720 = vcmp.eq.f32.partialorder %v719, 8.507059e+37
        %v721 = vand.u32 %v638, 2147483648
        %v722 = vor.u32 1.1754944e-38, %v721
        %v723 = vsel %vm720, %v722, %v718
        %v724 = vmul.f32 1.0, %v723
        %v725 = vrcp.pop %v639
        %v726 = vmul.f32 %v639, %v725
        %v727 = vsub.f32 1.0, %v726
        %v728 = vmul.f32 %v725, %v727
        %v729 = vadd.f32 %v725, %v728
        %vm730 = vweird.f32 %v639
        %vm731 = vweird.f32 %v725
        %vm732 = vmor %vm730, %vm731
        %v733 = vsel %vm732, %v725, %v729
        %v734 = vand.u32 2147483647, %v639
        %vm735 = vcmp.eq.f32.partialorder %v734, 8.507059e+37
        %v736 = vand.u32 %v639, 2147483648
        %v737 = vor.u32 1.1754944e-38, %v736
        %v738 = vsel %vm735, %v737, %v733
        %v739 = vmul.f32 1.0, %v738
        %v740 = vrcp.pop %v640
        %v741 = vmul.f32 %v640, %v740
        %v742 = vsub.f32 1.0, %v741
        %v743 = vmul.f32 %v740, %v742
        %v744 = vadd.f32 %v740, %v743
        %vm745 = vweird.f32 %v640
        %vm746 = vweird.f32 %v740
        %vm747 = vmor %vm745, %vm746
        %v748 = vsel %vm747, %v740, %v744
        %v749 = vand.u32 2147483647, %v640
        %vm750 = vcmp.eq.f32.partialorder %v749, 8.507059e+37
        %v751 = vand.u32 %v640, 2147483648
        %v752 = vor.u32 1.1754944e-38, %v751
        %v753 = vsel %vm750, %v752, %v748
        %v754 = vmul.f32 1.0, %v753
        %v755 = vrcp.pop %v641
        %v756 = vmul.f32 %v641, %v755
        %v757 = vsub.f32 1.0, %v756
        %v758 = vmul.f32 %v755, %v757
        %v759 = vadd.f32 %v755, %v758
        %vm760 = vweird.f32 %v641
        %vm761 = vweird.f32 %v755
        %vm762 = vmor %vm760, %vm761
        %v763 = vsel %vm762, %v755, %v759
        %v764 = vand.u32 2147483647, %v641
        %vm765 = vcmp.eq.f32.partialorder %v764, 8.507059e+37
        %v766 = vand.u32 %v641, 2147483648
        %v767 = vor.u32 1.1754944e-38, %v766
        %v768 = vsel %vm765, %v767, %v763
        %v769 = vmul.f32 1.0, %v768
        %v770 = vrcp.pop %v642
        %v771 = vmul.f32 %v642, %v770
        %v772 = vsub.f32 1.0, %v771
        %v773 = vmul.f32 %v770, %v772
        %v774 = vadd.f32 %v770, %v773
        %vm775 = vweird.f32 %v642
        %vm776 = vweird.f32 %v770
        %vm777 = vmor %vm775, %vm776
        %v778 = vsel %vm777, %v770, %v774
        %v779 = vand.u32 2147483647, %v642
        %vm780 = vcmp.eq.f32.partialorder %v779, 8.507059e+37
        %v781 = vand.u32 %v642, 2147483648
        %v782 = vor.u32 1.1754944e-38, %v781
        %v783 = vsel %vm780, %v782, %v778
        %v784 = vmul.f32 1.0, %v783
        %v785 = vrcp.pop %v643
        %v786 = vmul.f32 %v643, %v785
        %v787 = vsub.f32 1.0, %v786
        %v788 = vmul.f32 %v785, %v787
        %v789 = vadd.f32 %v785, %v788
        %vm790 = vweird.f32 %v643
        %vm791 = vweird.f32 %v785
        %vm792 = vmor %vm790, %vm791
        %v793 = vsel %vm792, %v785, %v789
        %v794 = vand.u32 2147483647, %v643
        %vm795 = vcmp.eq.f32.partialorder %v794, 8.507059e+37
        %v796 = vand.u32 %v643, 2147483648
        %v797 = vor.u32 1.1754944e-38, %v796
        %v798 = vsel %vm795, %v797, %v793
        %v799 = vmul.f32 1.0, %v798
        %v800 = vrcp.pop %v644
        %v801 = vmul.f32 %v644, %v800
        %v802 = vsub.f32 1.0, %v801
        %v803 = vmul.f32 %v800, %v802
        %v804 = vadd.f32 %v800, %v803
        %vm805 = vweird.f32 %v644
        %vm806 = vweird.f32 %v800
        %vm807 = vmor %vm805, %vm806
        %v808 = vsel %vm807, %v800, %v804
        %v809 = vand.u32 2147483647, %v644
        %vm810 = vcmp.eq.f32.partialorder %v809, 8.507059e+37
        %v811 = vand.u32 %v644, 2147483648
        %v812 = vor.u32 1.1754944e-38, %v811
        %v813 = vsel %vm810, %v812, %v808
        %v814 = vmul.f32 1.0, %v813
        %v815 = vrcp.pop %v645
        %v816 = vmul.f32 %v645, %v815
        %v817 = vsub.f32 1.0, %v816
        %v818 = vmul.f32 %v815, %v817
        %v819 = vadd.f32 %v815, %v818
        %vm820 = vweird.f32 %v645
        %vm821 = vweird.f32 %v815
        %vm822 = vmor %vm820, %vm821
        %v823 = vsel %vm822, %v815, %v819
        %v824 = vand.u32 2147483647, %v645
        %vm825 = vcmp.eq.f32.partialorder %v824, 8.507059e+37
        %v826 = vand.u32 %v645, 2147483648
        %v827 = vor.u32 1.1754944e-38, %v826
        %v828 = vsel %vm825, %v827, %v823
        %v829 = vmul.f32 1.0, %v828
        %v830 = vrcp.pop %v646
        %v831 = vmul.f32 %v646, %v830
        %v832 = vsub.f32 1.0, %v831
        %v833 = vmul.f32 %v830, %v832
        %v834 = vadd.f32 %v830, %v833
        %vm835 = vweird.f32 %v646
        %vm836 = vweird.f32 %v830
        %vm837 = vmor %vm835, %vm836
        %v838 = vsel %vm837, %v830, %v834
        %v839 = vand.u32 2147483647, %v646
        %vm840 = vcmp.eq.f32.partialorder %v839, 8.507059e+37
        %v841 = vand.u32 %v646, 2147483648
        %v842 = vor.u32 1.1754944e-38, %v841
        %v843 = vsel %vm840, %v842, %v838
        %v844 = vmul.f32 1.0, %v843
        %v845 = vrcp.pop %v647
        %v846 = vmul.f32 %v647, %v845
        %v847 = vsub.f32 1.0, %v846
        %v848 = vmul.f32 %v845, %v847
        %v849 = vadd.f32 %v845, %v848
        %vm850 = vweird.f32 %v647
        %vm851 = vweird.f32 %v845
        %vm852 = vmor %vm850, %vm851
        %v853 = vsel %vm852, %v845, %v849
        %v854 = vand.u32 2147483647, %v647
        %vm855 = vcmp.eq.f32.partialorder %v854, 8.507059e+37
        %v856 = vand.u32 %v647, 2147483648
        %v857 = vor.u32 1.1754944e-38, %v856
        %v858 = vsel %vm855, %v857, %v853
        %v859 = vmul.f32 1.0, %v858
        %v860 = vrcp.pop %v648
        %v861 = vmul.f32 %v648, %v860
        %v862 = vsub.f32 1.0, %v861
        %v863 = vmul.f32 %v860, %v862
        %v864 = vadd.f32 %v860, %v863
        %vm865 = vweird.f32 %v648
        %vm866 = vweird.f32 %v860
        %vm867 = vmor %vm865, %vm866
        %v868 = vsel %vm867, %v860, %v864
        %v869 = vand.u32 2147483647, %v648
        %vm870 = vcmp.eq.f32.partialorder %v869, 8.507059e+37
        %v871 = vand.u32 %v648, 2147483648
        %v872 = vor.u32 1.1754944e-38, %v871
        %v873 = vsel %vm870, %v872, %v868
        %v874 = vmul.f32 1.0, %v873
        %v875 = vrcp.pop %v649
        %v876 = vmul.f32 %v649, %v875
        %v877 = vsub.f32 1.0, %v876
        %v878 = vmul.f32 %v875, %v877
        %v879 = vadd.f32 %v875, %v878
        %vm880 = vweird.f32 %v649
        %vm881 = vweird.f32 %v875
        %vm882 = vmor %vm880, %vm881
        %v883 = vsel %vm882, %v875, %v879
        %v884 = vand.u32 2147483647, %v649
        %vm885 = vcmp.eq.f32.partialorder %v884, 8.507059e+37
        %v886 = vand.u32 %v649, 2147483648
        %v887 = vor.u32 1.1754944e-38, %v886
        %v888 = vsel %vm885, %v887, %v883
        %v889 = vmul.f32 1.0, %v888
        %v890 = vmul.f32 %v211, %v664
        %v891 = vmul.f32 %v212, %v679
        %v892 = vmul.f32 %v213, %v694
        %v893 = vmul.f32 %v214, %v709
        %v894 = vmul.f32 %v215, %v724
        %v895 = vmul.f32 %v216, %v739
        %v896 = vmul.f32 %v217, %v754
        %v897 = vmul.f32 %v218, %v769
        %v898 = vmul.f32 %v219, %v784
        %v899 = vmul.f32 %v220, %v799
        %v900 = vmul.f32 %v221, %v814
        %v901 = vmul.f32 %v222, %v829
        %v902 = vmul.f32 %v223, %v844
        %v903 = vmul.f32 %v224, %v859
        %v904 = vmul.f32 %v225, %v874
        %v905 = vmul.f32 %v226, %v889
        %906 = vst [vmem:[%s203] sm:$0xff] %v890
        %907 = vst [vmem:[%s203 + $0x8] sm:$0xff] %v891
        %908 = vst [vmem:[%s203 + $0x10] sm:$0xff] %v892
        %909 = vst [vmem:[%s203 + $0x18] sm:$0xff] %v893
        %910 = vst [vmem:[%s203 + $0x20] sm:$0xff] %v894
        %911 = vst [vmem:[%s203 + $0x28] sm:$0xff] %v895
        %912 = vst [vmem:[%s203 + $0x30] sm:$0xff] %v896
        %913 = vst [vmem:[%s203 + $0x38] sm:$0xff] %v897
        %914 = vst [vmem:[%s203 + $0x40] sm:$0xff] %v898
        %915 = vst [vmem:[%s203 + $0x48] sm:$0xff] %v899
        %916 = vst [vmem:[%s203 + $0x50] sm:$0xff] %v900
        %917 = vst [vmem:[%s203 + $0x58] sm:$0xff] %v901
        %918 = vst [vmem:[%s203 + $0x60] sm:$0xff] %v902
        %919 = vst [vmem:[%s203 + $0x68] sm:$0xff] %v903
        %920 = vst [vmem:[%s203 + $0x70] sm:$0xff] %v904
        %921 = vst [vmem:[%s203 + $0x78] sm:$0xff] %v905
        %s922 = sand.u32 %s73, 1
        %s923 = sand.u32 %s73, 1
        %s924 = smul.addr %s923, 128
        %s925 = scalar_lea.vmem [#allocation3], %s924
        // Predicated region
        $region52: #{shuffle_attention_forward.1} parent=46 // pred_check
          %p926 = pneg %p83
        $region53: #{shuffle_attention_forward.1} parent=46 // pred_check_branch
          %928 = sbr.rel (%p926) target = $region55
        $region54: #{shuffle_attention_forward.1} parent=46 // pred_region
          %s929 = smul.u32 2, %s13
          %s930 = smul.addr %s929, 8
          %s931 = scalar_lea.vmem %s2, %s930
          // Predicated region
          $region56: #{shuffle_attention_forward.1} parent=54 // pred_check
            _
          $region57: #{shuffle_attention_forward.1} parent=54 // pred_check_branch
            %933 = sbr.rel (0) target = $region59
          $region58: #{shuffle_attention_forward.1} parent=54 // pred_region
            // Predicated region
            $region60: #{shuffle_attention_forward.1} parent=58 // pred_check
              _
            $region61: #{shuffle_attention_forward.1} parent=58 // pred_check_branch
              %935 = sbr.rel (0) target = $region63
            $region62: #{shuffle_attention_forward.1} parent=58 // pred_region
              loop: start=0, step=1, limit=1
              $region64: #{shuffle_attention_forward.1} parent=62 // loop_pre_header
                _
              $region65: #{shuffle_attention_forward.1} parent=62 // loop_header
                %s937 = sphi 0, %s941
                %p938 = scmp.ge.s32.totalorder %s937, 1
                %s942 = sphi %s925, %s925
                %s943 = sphi %s931, %s931
              $region66: #{shuffle_attention_forward.1} parent=62 // loop_header_branch
                %940 = sbr.rel (%p938) target = $region70
              $region67: #{shuffle_attention_forward.1} parent=62 // loop_body
                %v944 = vld [vmem:[%s942] sm:$0xff]
                %945 = vst [vmem:[%s943] sm:$0xff] %v944
                %v946 = vld [vmem:[%s942 + $0x8] sm:$0xff]
                %947 = vst [vmem:[%s943 + $0x8] sm:$0xff] %v946
                %v948 = vld [vmem:[%s942 + $0x10] sm:$0xff]
                %949 = vst [vmem:[%s943 + $0x20] sm:$0xff] %v948
                %v950 = vld [vmem:[%s942 + $0x18] sm:$0xff]
                %951 = vst [vmem:[%s943 + $0x28] sm:$0xff] %v950
                %v952 = vld [vmem:[%s942 + $0x20] sm:$0xff]
                %953 = vst [vmem:[%s943 + $0x40] sm:$0xff] %v952
                %v954 = vld [vmem:[%s942 + $0x28] sm:$0xff]
                %955 = vst [vmem:[%s943 + $0x48] sm:$0xff] %v954
                %v956 = vld [vmem:[%s942 + $0x30] sm:$0xff]
                %957 = vst [vmem:[%s943 + $0x60] sm:$0xff] %v956
                %v958 = vld [vmem:[%s942 + $0x38] sm:$0xff]
                %959 = vst [vmem:[%s943 + $0x68] sm:$0xff] %v958
                %v960 = vld [vmem:[%s942 + $0x40] sm:$0xff]
                %961 = vst [vmem:[%s943 + $0x80] sm:$0xff] %v960
                %v962 = vld [vmem:[%s942 + $0x48] sm:$0xff]
                %963 = vst [vmem:[%s943 + $0x88] sm:$0xff] %v962
                %v964 = vld [vmem:[%s942 + $0x50] sm:$0xff]
                %965 = vst [vmem:[%s943 + $0xa0] sm:$0xff] %v964
                %v966 = vld [vmem:[%s942 + $0x58] sm:$0xff]
                %967 = vst [vmem:[%s943 + $0xa8] sm:$0xff] %v966
                %v968 = vld [vmem:[%s942 + $0x60] sm:$0xff]
                %969 = vst [vmem:[%s943 + $0xc0] sm:$0xff] %v968
                %v970 = vld [vmem:[%s942 + $0x68] sm:$0xff]
                %971 = vst [vmem:[%s943 + $0xc8] sm:$0xff] %v970
                %v972 = vld [vmem:[%s942 + $0x70] sm:$0xff]
                %973 = vst [vmem:[%s943 + $0xe0] sm:$0xff] %v972
                %v974 = vld [vmem:[%s942 + $0x78] sm:$0xff]
                %975 = vst [vmem:[%s943 + $0xe8] sm:$0xff] %v974
              $region68: #{shuffle_attention_forward.1} parent=62 // loop_footer
                %s941 = sadd.s32 1, %s937
              $region69: #{shuffle_attention_forward.1} parent=62 // loop_footer_branch
                %936 = sbr.rel target = $region65
              $region70: #{shuffle_attention_forward.1} parent=62 // loop_exit
                _
            $region63: #{shuffle_attention_forward.1} parent=58 // pred_fallthru
              _
            // Predicated region
            $region71: #{shuffle_attention_forward.1} parent=58 // pred_check
              _
            $region72: #{shuffle_attention_forward.1} parent=58 // pred_check_branch
              %977 = sbr.rel target = $region74
            $region73: #{shuffle_attention_forward.1} parent=58 // pred_region
              _
            $region74: #{shuffle_attention_forward.1} parent=58 // pred_fallthru
              _
          $region59: #{shuffle_attention_forward.1} parent=54 // pred_fallthru
            _
          %978 = vnop
        $region55: #{shuffle_attention_forward.1} parent=46 // pred_fallthru
          _
      $region47: #{shuffle_attention_forward.1} parent=5 // pred_fallthru
        _
      %p979 = scmp.le.s32.totalorder 2, %s8
      // Predicated region
      $region75: #{shuffle_attention_forward.1} parent=5 // pred_check
        %p980 = pneg %p979
      $region76: #{shuffle_attention_forward.1} parent=5 // pred_check_branch
        %982 = sbr.rel (%p980) target = $region78
      $region77: #{shuffle_attention_forward.1} parent=5 // pred_region
        %s983 = ssub.s32 %s8, 2
        // Predicated region
        $region79: #{shuffle_attention_forward.1} parent=77 // pred_check
          %p984 = pneg %p89
        $region80: #{shuffle_attention_forward.1} parent=77 // pred_check_branch
          %986 = sbr.rel (%p984) target = $region82
        $region81: #{shuffle_attention_forward.1} parent=77 // pred_region
          %s987 = sand.u32 %s74, 1
          %s988 = sand.u32 %s74, 1
          %s989 = smul.addr %s988, 128
          %s990 = scalar_lea.vmem [#allocation3], %s989
        $region82: #{shuffle_attention_forward.1} parent=77 // pred_fallthru
          _
      $region78: #{shuffle_attention_forward.1} parent=5 // pred_fallthru
        _
    $region6: #{shuffle_attention_forward.1} parent=1 // loop_footer
      %s12 = sadd.s32 1, %s8
    $region7: #{shuffle_attention_forward.1} parent=1 // loop_footer_branch
      %7 = sbr.rel target = $region3
    $region8: #{shuffle_attention_forward.1} parent=1 // loop_exit
      _

</llo_original>
